<compile_context>
chip_gen: v5e
topology: v5e:2x2
jax: 0.10.0
libtpu: 0.0.40
codegen_flags: <defaults>
</compile_context>

<pallas_src>
import math
import jax
import jax.numpy as jnp
from jax import lax
from jax.experimental import pallas as pl
from jax.experimental.pallas import tpu as pltpu

# ---- model hyper-params (small, consistent with the module) ----
D_MODEL = 32
NHEAD = 4
HEAD_DIM = D_MODEL // NHEAD
B = 2       # batch
S = 16      # src (key/value) sequence length
T = 8       # tar (query) sequence length
LN_EPS = 1e-5

BT = B * T        # fused query rows
BS = B * S        # fused key/value rows
BR = BT + BS      # fused [tar ; src] rows


def attention_layer_kernel(x_ref, wins_ref, wfold_ref, vecs_ref, out_ref):
    # Whole problem in one grid step.
    x = x_ref[...]                      # (BT+BS, D): [tar rows ; src rows]

    # Packed vectors: rows = [bq*scale, bk, bv, b_fold, gamma, beta, 0, 0]
    vecs = vecs_ref[...]                # (8, D)
    bq = vecs[0:1, :]                   # already scaled by 1/sqrt(hd)
    bk = vecs[1:2, :]
    bv = vecs[2:3, :]
    bfold = vecs[3:4, :]                # bo @ W1.T + b1
    gamma = vecs[4:5, :]
    beta = vecs[5:6, :]

    # --- single fused in-projection: [q|k|v] = x @ [Wq.T*s | Wk.T | Wv.T] ---
    y = jnp.dot(x, wins_ref[...], preferred_element_type=jnp.float32)   # (BR, 3D)

    q = y[:BT, 0:D_MODEL] + bq                       # (BT, D), pre-scaled
    k = y[BT:, D_MODEL:2 * D_MODEL] + bk             # (BS, D)
    v = y[BT:, 2 * D_MODEL:3 * D_MODEL] + bv         # (BS, D)

    contract_last = (((1,), (1,)), ((), ()))   # contract last dims, no batch dims

    # --- per-(batch, head) score tiles, stacked for ONE batched softmax ---
    s_tiles = []
    for b in range(B):
        qb = q[b * T:(b + 1) * T, :]                 # (T, D)
        kb = k[b * S:(b + 1) * S, :]                 # (S, D)
        for h in range(NHEAD):
            lo, hi = h * HEAD_DIM, (h + 1) * HEAD_DIM
            s_tiles.append(
                lax.dot_general(qb[:, lo:hi], kb[:, lo:hi], contract_last,
                                preferred_element_type=jnp.float32))    # (T, S)
    s_all = jnp.concatenate(s_tiles, axis=0)         # (B*NHEAD*T, S)

    s_all = s_all - jnp.max(s_all, axis=-1, keepdims=True)
    p_all = jnp.exp(s_all)
    p_all = p_all / jnp.sum(p_all, axis=-1, keepdims=True)

    # --- PV per (batch, head); concat heads along lanes, batches along sublanes ---
    rows = []
    for b in range(B):
        vb = v[b * S:(b + 1) * S, :]                 # (S, D)
        heads = []
        for h in range(NHEAD):
            idx = b * NHEAD + h
            p = p_all[idx * T:(idx + 1) * T, :]      # (T, S)
            heads.append(jnp.dot(p, vb[:, h * HEAD_DIM:(h + 1) * HEAD_DIM],
                                 preferred_element_type=jnp.float32))   # (T, hd)
        rows.append(jnp.concatenate(heads, axis=1))  # (T, D)
    o = jnp.concatenate(rows, axis=0)                # (BT, D)

    # dropout1: identity (inference mode)

    # --- fused output-projection + linear1:  z = o @ (Wo.T @ W1.T) + b_fold ---
    z = jnp.dot(o, wfold_ref[...], preferred_element_type=jnp.float32) + bfold

    # --- LayerNorm (norm1) ---
    mean = jnp.mean(z, axis=-1, keepdims=True)
    var = jnp.mean((z - mean) ** 2, axis=-1, keepdims=True)
    zn = (z - mean) * lax.rsqrt(var + LN_EPS)
    out_ref[...] = (zn * gamma + beta).astype(out_ref.dtype)


def attention_layer_forward(src, tar, params):
    """src: (B, S, D), tar: (B, T, D) -> (B, T, D)"""
    (wq, wk, wv, bq, bk, bv, wo, bo, w1, b1, gamma, beta) = params

    scale = 1.0 / math.sqrt(HEAD_DIM)

    # Fused row slab [tar ; src]  (free, contiguous reshapes + one concat).
    x = jnp.concatenate(
        [tar.reshape(BT, D_MODEL), src.reshape(BS, D_MODEL)], axis=0)   # (BR, D)

    # Host-side weight prep.
    wins = jnp.concatenate([wq.T * scale, wk.T, wv.T], axis=1)          # (D, 3D)
    wfold = wo.T @ w1.T                                                 # (D, D)
    bfold = bo @ w1.T + b1                                              # (D,)
    vecs = jnp.stack(
        [bq * scale, bk, bv, bfold, gamma, beta,
         jnp.zeros_like(bq), jnp.zeros_like(bq)], axis=0)               # (8, D)

    def full(shape):
        return pl.BlockSpec(shape, lambda i: (0,) * len(shape))

    flops = (2 * BR * D_MODEL * 3 * D_MODEL               # fused Q/K/V projection
             + 2 * B * NHEAD * 2 * T * S * HEAD_DIM       # scores + PV
             + 2 * BT * D_MODEL * D_MODEL)                # fused out-proj/linear1
    transcendentals = B * NHEAD * T * S + BT              # exp + rsqrt
    bytes_accessed = 4 * (x.size + wins.size + wfold.size + vecs.size
                          + BT * D_MODEL)

    out2d = pl.pallas_call(
        attention_layer_kernel,
        out_shape=jax.ShapeDtypeStruct((BT, D_MODEL), jnp.float32),
        grid=(1,),
        in_specs=[
            full((BR, D_MODEL)),                # [tar ; src] rows
            full((D_MODEL, 3 * D_MODEL)),       # [Wq.T*s | Wk.T | Wv.T]
            full((D_MODEL, D_MODEL)),           # Wo.T @ W1.T
            full((8, D_MODEL)),                 # packed biases / LN params
        ],
        out_specs=full((BT, D_MODEL)),
        compiler_params=pltpu.CompilerParams(
            dimension_semantics=("arbitrary",)),
        cost_estimate=pl.CostEstimate(flops=flops,
                                      transcendentals=transcendentals,
                                      bytes_accessed=bytes_accessed),
    )(x, wins, wfold, vecs)

    return out2d.reshape(B, T, D_MODEL)


def reference_forward(src, tar, params):
    """Pure-JAX reference matching torch semantics (eval mode)."""
    (wq, wk, wv, bq, bk, bv, wo, bo, w1, b1, gamma, beta) = params
    q = tar @ wq.T + bq     # (B, T, D)
    k = src @ wk.T + bk     # (B, S, D)
    v = src @ wv.T + bv
    q = q.reshape(B, T, NHEAD, HEAD_DIM).transpose(0, 2, 1, 3)
    k = k.reshape(B, S, NHEAD, HEAD_DIM).transpose(0, 2, 1, 3)
    v = v.reshape(B, S, NHEAD, HEAD_DIM).transpose(0, 2, 1, 3)
    scores = jnp.einsum("bhtd,bhsd->bhts", q, k) / math.sqrt(HEAD_DIM)
    p = jax.nn.softmax(scores, axis=-1)
    o = jnp.einsum("bhts,bhsd->bhtd", p, v)
    o = o.transpose(0, 2, 1, 3).reshape(B, T, D_MODEL)
    x = o @ wo.T + bo
    x = x @ w1.T + b1
    mean = x.mean(-1, keepdims=True)
    var = ((x - mean) ** 2).mean(-1, keepdims=True)
    return (x - mean) / jnp.sqrt(var + LN_EPS) * gamma + beta


def make_params(key):
    ks = jax.random.split(key, 8)
    scale = 1.0 / math.sqrt(D_MODEL)
    wq = jax.random.normal(ks[0], (D_MODEL, D_MODEL), jnp.float32) * scale
    wk = jax.random.normal(ks[1], (D_MODEL, D_MODEL), jnp.float32) * scale
    wv = jax.random.normal(ks[2], (D_MODEL, D_MODEL), jnp.float32) * scale
    bqkv = jax.random.normal(ks[3], (3 * D_MODEL,), jnp.float32) * 0.02
    bq, bk, bv = bqkv[:D_MODEL], bqkv[D_MODEL:2 * D_MODEL], bqkv[2 * D_MODEL:]
    wo = jax.random.normal(ks[4], (D_MODEL, D_MODEL), jnp.float32) * scale
    bo = jax.random.normal(ks[5], (D_MODEL,), jnp.float32) * 0.02
    w1 = jax.random.normal(ks[6], (D_MODEL, D_MODEL), jnp.float32) * scale
    b1 = jax.random.normal(ks[7], (D_MODEL,), jnp.float32) * 0.02
    gamma = jnp.ones((D_MODEL,), jnp.float32)
    beta = jnp.zeros((D_MODEL,), jnp.float32)
    return (wq, wk, wv, bq, bk, bv, wo, bo, w1, b1, gamma, beta)


if __name__ == "__main__":
    key = jax.random.PRNGKey(0)
    k_src, k_tar, k_par = jax.random.split(key, 3)
    src = jax.random.normal(k_src, (B, S, D_MODEL), jnp.float32)
    tar = jax.random.normal(k_tar, (B, T, D_MODEL), jnp.float32)
    params = make_params(k_par)

    out = attention_layer_forward(src, tar, params)
    out = jax.block_until_ready(out)

    ref = reference_forward(src, tar, params)
    assert out.shape == (B, T, D_MODEL)
    assert jnp.allclose(out, ref, atol=1e-4, rtol=1e-4), "mismatch vs reference"

    print("KERNEL_OK")
</pallas_src>

<mosaic_0001>
module attributes {stable_mosaic.version = 11 : i64} {
  func.func @attention_layer_kernel(%arg0: i32, %arg1: memref<48x32xf32, #tpu.memory_space<vmem>>, %arg2: memref<32x96xf32, #tpu.memory_space<vmem>>, %arg3: memref<32x32xf32, #tpu.memory_space<vmem>>, %arg4: memref<8x32xf32, #tpu.memory_space<vmem>>, %arg5: memref<16x32xf32, #tpu.memory_space<vmem>>) attributes {dimension_semantics = [#tpu.dimension_semantics<arbitrary>], iteration_bounds = array<i64: 1>, scalar_prefetch = 0 : i64, scratch_operands = 0 : i64, tpu.core_type = #tpu.core_type<tc>, window_params = [{pipeline_mode = #tpu.pipeline_mode<synchronous>, transform_indices = @transform_0, window_bounds = array<i64: 48, 32>}, {pipeline_mode = #tpu.pipeline_mode<synchronous>, transform_indices = @transform_1, window_bounds = array<i64: 32, 96>}, {pipeline_mode = #tpu.pipeline_mode<synchronous>, transform_indices = @transform_2, window_bounds = array<i64: 32, 32>}, {pipeline_mode = #tpu.pipeline_mode<synchronous>, transform_indices = @transform_3, window_bounds = array<i64: 8, 32>}, {pipeline_mode = #tpu.pipeline_mode<synchronous>, transform_indices = @transform_4, window_bounds = array<i64: 16, 32>}]} {
    %c0 = arith.constant 0 : index
    %c0_0 = arith.constant 0 : index
    %0 = vector.load %arg1[%c0, %c0_0] : memref<48x32xf32, #tpu.memory_space<vmem>>, vector<48x32xf32>
    %c0_1 = arith.constant 0 : index
    %c0_2 = arith.constant 0 : index
    %1 = vector.load %arg4[%c0_1, %c0_2] : memref<8x32xf32, #tpu.memory_space<vmem>>, vector<8x32xf32>
    %2 = vector.extract_strided_slice %1 {offsets = [0, 0], sizes = [1, 32], strides = [1, 1]} : vector<8x32xf32> to vector<1x32xf32>
    %3 = vector.extract_strided_slice %1 {offsets = [1, 0], sizes = [1, 32], strides = [1, 1]} : vector<8x32xf32> to vector<1x32xf32>
    %4 = vector.extract_strided_slice %1 {offsets = [2, 0], sizes = [1, 32], strides = [1, 1]} : vector<8x32xf32> to vector<1x32xf32>
    %5 = vector.extract_strided_slice %1 {offsets = [3, 0], sizes = [1, 32], strides = [1, 1]} : vector<8x32xf32> to vector<1x32xf32>
    %6 = vector.extract_strided_slice %1 {offsets = [4, 0], sizes = [1, 32], strides = [1, 1]} : vector<8x32xf32> to vector<1x32xf32>
    %7 = vector.extract_strided_slice %1 {offsets = [5, 0], sizes = [1, 32], strides = [1, 1]} : vector<8x32xf32> to vector<1x32xf32>
    %c0_3 = arith.constant 0 : index
    %c0_4 = arith.constant 0 : index
    %8 = vector.load %arg2[%c0_3, %c0_4] : memref<32x96xf32, #tpu.memory_space<vmem>>, vector<32x96xf32>
    %cst = arith.constant dense<0.000000e+00> : vector<48x96xf32>
    %9 = tpu.matmul %0, %8, %cst {dimension_numbers = #tpu.dot_dimension_numbers<[1], [0], [0], [1], [0, 0, 1, 1], [], []>} : vector<48x32xf32>, vector<32x96xf32>, vector<48x96xf32> -> vector<48x96xf32>
    %10 = vector.extract_strided_slice %9 {offsets = [0, 0], sizes = [16, 32], strides = [1, 1]} : vector<48x96xf32> to vector<16x32xf32>
    %11 = vector.broadcast %2 : vector<1x32xf32> to vector<16x32xf32>
    %12 = arith.addf %10, %11 : vector<16x32xf32>
    %13 = vector.extract_strided_slice %9 {offsets = [16, 32], sizes = [32, 32], strides = [1, 1]} : vector<48x96xf32> to vector<32x32xf32>
    %14 = vector.broadcast %3 : vector<1x32xf32> to vector<32x32xf32>
    %15 = arith.addf %13, %14 : vector<32x32xf32>
    %16 = vector.extract_strided_slice %9 {offsets = [16, 64], sizes = [32, 32], strides = [1, 1]} : vector<48x96xf32> to vector<32x32xf32>
    %17 = vector.broadcast %4 : vector<1x32xf32> to vector<32x32xf32>
    %18 = arith.addf %16, %17 : vector<32x32xf32>
    %19 = vector.extract_strided_slice %12 {offsets = [0, 0], sizes = [8, 32], strides = [1, 1]} : vector<16x32xf32> to vector<8x32xf32>
    %20 = vector.extract_strided_slice %15 {offsets = [0, 0], sizes = [16, 32], strides = [1, 1]} : vector<32x32xf32> to vector<16x32xf32>
    %21 = vector.extract_strided_slice %19 {offsets = [0, 0], sizes = [8, 8], strides = [1, 1]} : vector<8x32xf32> to vector<8x8xf32>
    %22 = vector.extract_strided_slice %20 {offsets = [0, 0], sizes = [16, 8], strides = [1, 1]} : vector<16x32xf32> to vector<16x8xf32>
    %cst_5 = arith.constant dense<0.000000e+00> : vector<8x16xf32>
    %23 = tpu.matmul %21, %22, %cst_5 {dimension_numbers = #tpu.dot_dimension_numbers<[1], [1], [0], [0], [0, 0, 1, 0], [], []>} : vector<8x8xf32>, vector<16x8xf32>, vector<8x16xf32> -> vector<8x16xf32>
    %24 = vector.extract_strided_slice %19 {offsets = [0, 8], sizes = [8, 8], strides = [1, 1]} : vector<8x32xf32> to vector<8x8xf32>
    %25 = vector.extract_strided_slice %20 {offsets = [0, 8], sizes = [16, 8], strides = [1, 1]} : vector<16x32xf32> to vector<16x8xf32>
    %cst_6 = arith.constant dense<0.000000e+00> : vector<8x16xf32>
    %26 = tpu.matmul %24, %25, %cst_6 {dimension_numbers = #tpu.dot_dimension_numbers<[1], [1], [0], [0], [0, 0, 1, 0], [], []>} : vector<8x8xf32>, vector<16x8xf32>, vector<8x16xf32> -> vector<8x16xf32>
    %27 = vector.extract_strided_slice %19 {offsets = [0, 16], sizes = [8, 8], strides = [1, 1]} : vector<8x32xf32> to vector<8x8xf32>
    %28 = vector.extract_strided_slice %20 {offsets = [0, 16], sizes = [16, 8], strides = [1, 1]} : vector<16x32xf32> to vector<16x8xf32>
    %cst_7 = arith.constant dense<0.000000e+00> : vector<8x16xf32>
    %29 = tpu.matmul %27, %28, %cst_7 {dimension_numbers = #tpu.dot_dimension_numbers<[1], [1], [0], [0], [0, 0, 1, 0], [], []>} : vector<8x8xf32>, vector<16x8xf32>, vector<8x16xf32> -> vector<8x16xf32>
    %30 = vector.extract_strided_slice %19 {offsets = [0, 24], sizes = [8, 8], strides = [1, 1]} : vector<8x32xf32> to vector<8x8xf32>
    %31 = vector.extract_strided_slice %20 {offsets = [0, 24], sizes = [16, 8], strides = [1, 1]} : vector<16x32xf32> to vector<16x8xf32>
    %cst_8 = arith.constant dense<0.000000e+00> : vector<8x16xf32>
    %32 = tpu.matmul %30, %31, %cst_8 {dimension_numbers = #tpu.dot_dimension_numbers<[1], [1], [0], [0], [0, 0, 1, 0], [], []>} : vector<8x8xf32>, vector<16x8xf32>, vector<8x16xf32> -> vector<8x16xf32>
    %33 = vector.extract_strided_slice %12 {offsets = [8, 0], sizes = [8, 32], strides = [1, 1]} : vector<16x32xf32> to vector<8x32xf32>
    %34 = vector.extract_strided_slice %15 {offsets = [16, 0], sizes = [16, 32], strides = [1, 1]} : vector<32x32xf32> to vector<16x32xf32>
    %35 = vector.extract_strided_slice %33 {offsets = [0, 0], sizes = [8, 8], strides = [1, 1]} : vector<8x32xf32> to vector<8x8xf32>
    %36 = vector.extract_strided_slice %34 {offsets = [0, 0], sizes = [16, 8], strides = [1, 1]} : vector<16x32xf32> to vector<16x8xf32>
    %cst_9 = arith.constant dense<0.000000e+00> : vector<8x16xf32>
    %37 = tpu.matmul %35, %36, %cst_9 {dimension_numbers = #tpu.dot_dimension_numbers<[1], [1], [0], [0], [0, 0, 1, 0], [], []>} : vector<8x8xf32>, vector<16x8xf32>, vector<8x16xf32> -> vector<8x16xf32>
    %38 = vector.extract_strided_slice %33 {offsets = [0, 8], sizes = [8, 8], strides = [1, 1]} : vector<8x32xf32> to vector<8x8xf32>
    %39 = vector.extract_strided_slice %34 {offsets = [0, 8], sizes = [16, 8], strides = [1, 1]} : vector<16x32xf32> to vector<16x8xf32>
    %cst_10 = arith.constant dense<0.000000e+00> : vector<8x16xf32>
    %40 = tpu.matmul %38, %39, %cst_10 {dimension_numbers = #tpu.dot_dimension_numbers<[1], [1], [0], [0], [0, 0, 1, 0], [], []>} : vector<8x8xf32>, vector<16x8xf32>, vector<8x16xf32> -> vector<8x16xf32>
    %41 = vector.extract_strided_slice %33 {offsets = [0, 16], sizes = [8, 8], strides = [1, 1]} : vector<8x32xf32> to vector<8x8xf32>
    %42 = vector.extract_strided_slice %34 {offsets = [0, 16], sizes = [16, 8], strides = [1, 1]} : vector<16x32xf32> to vector<16x8xf32>
    %cst_11 = arith.constant dense<0.000000e+00> : vector<8x16xf32>
    %43 = tpu.matmul %41, %42, %cst_11 {dimension_numbers = #tpu.dot_dimension_numbers<[1], [1], [0], [0], [0, 0, 1, 0], [], []>} : vector<8x8xf32>, vector<16x8xf32>, vector<8x16xf32> -> vector<8x16xf32>
    %44 = vector.extract_strided_slice %33 {offsets = [0, 24], sizes = [8, 8], strides = [1, 1]} : vector<8x32xf32> to vector<8x8xf32>
    %45 = vector.extract_strided_slice %34 {offsets = [0, 24], sizes = [16, 8], strides = [1, 1]} : vector<16x32xf32> to vector<16x8xf32>
    %cst_12 = arith.constant dense<0.000000e+00> : vector<8x16xf32>
    %46 = tpu.matmul %44, %45, %cst_12 {dimension_numbers = #tpu.dot_dimension_numbers<[1], [1], [0], [0], [0, 0, 1, 0], [], []>} : vector<8x8xf32>, vector<16x8xf32>, vector<8x16xf32> -> vector<8x16xf32>
    %47 = tpu.concatenate %23, %26, %29, %32, %37, %40, %43, %46 in 0 : vector<8x16xf32>, vector<8x16xf32>, vector<8x16xf32>, vector<8x16xf32>, vector<8x16xf32>, vector<8x16xf32>, vector<8x16xf32>, vector<8x16xf32> -> vector<64x16xf32>
    %cst_13 = arith.constant dense<0xFF800000> : vector<64xf32>
    %48 = vector.multi_reduction <maximumf>, %47, %cst_13 [1] : vector<64x16xf32> to vector<64xf32>
    %49 = vector.shape_cast %48 : vector<64xf32> to vector<64x1xf32>
    %50 = vector.broadcast %49 : vector<64x1xf32> to vector<64x16xf32>
    %51 = arith.subf %47, %50 : vector<64x16xf32>
    %52 = math.exp %51 : vector<64x16xf32>
    %cst_14 = arith.constant dense<0.000000e+00> : vector<64xf32>
    %53 = vector.multi_reduction <add>, %52, %cst_14 [1] : vector<64x16xf32> to vector<64xf32>
    %54 = vector.shape_cast %53 : vector<64xf32> to vector<64x1xf32>
    %55 = vector.broadcast %54 : vector<64x1xf32> to vector<64x16xf32>
    %56 = arith.divf %52, %55 : vector<64x16xf32>
    %57 = vector.extract_strided_slice %18 {offsets = [0, 0], sizes = [16, 32], strides = [1, 1]} : vector<32x32xf32> to vector<16x32xf32>
    %58 = vector.extract_strided_slice %56 {offsets = [0, 0], sizes = [8, 16], strides = [1, 1]} : vector<64x16xf32> to vector<8x16xf32>
    %59 = vector.extract_strided_slice %57 {offsets = [0, 0], sizes = [16, 8], strides = [1, 1]} : vector<16x32xf32> to vector<16x8xf32>
    %cst_15 = arith.constant dense<0.000000e+00> : vector<8x8xf32>
    %60 = tpu.matmul %58, %59, %cst_15 {dimension_numbers = #tpu.dot_dimension_numbers<[1], [0], [0], [1], [0, 0, 1, 1], [], []>} : vector<8x16xf32>, vector<16x8xf32>, vector<8x8xf32> -> vector<8x8xf32>
    %61 = vector.extract_strided_slice %56 {offsets = [8, 0], sizes = [8, 16], strides = [1, 1]} : vector<64x16xf32> to vector<8x16xf32>
    %62 = vector.extract_strided_slice %57 {offsets = [0, 8], sizes = [16, 8], strides = [1, 1]} : vector<16x32xf32> to vector<16x8xf32>
    %cst_16 = arith.constant dense<0.000000e+00> : vector<8x8xf32>
    %63 = tpu.matmul %61, %62, %cst_16 {dimension_numbers = #tpu.dot_dimension_numbers<[1], [0], [0], [1], [0, 0, 1, 1], [], []>} : vector<8x16xf32>, vector<16x8xf32>, vector<8x8xf32> -> vector<8x8xf32>
    %64 = vector.extract_strided_slice %56 {offsets = [16, 0], sizes = [8, 16], strides = [1, 1]} : vector<64x16xf32> to vector<8x16xf32>
    %65 = vector.extract_strided_slice %57 {offsets = [0, 16], sizes = [16, 8], strides = [1, 1]} : vector<16x32xf32> to vector<16x8xf32>
    %cst_17 = arith.constant dense<0.000000e+00> : vector<8x8xf32>
    %66 = tpu.matmul %64, %65, %cst_17 {dimension_numbers = #tpu.dot_dimension_numbers<[1], [0], [0], [1], [0, 0, 1, 1], [], []>} : vector<8x16xf32>, vector<16x8xf32>, vector<8x8xf32> -> vector<8x8xf32>
    %67 = vector.extract_strided_slice %56 {offsets = [24, 0], sizes = [8, 16], strides = [1, 1]} : vector<64x16xf32> to vector<8x16xf32>
    %68 = vector.extract_strided_slice %57 {offsets = [0, 24], sizes = [16, 8], strides = [1, 1]} : vector<16x32xf32> to vector<16x8xf32>
    %cst_18 = arith.constant dense<0.000000e+00> : vector<8x8xf32>
    %69 = tpu.matmul %67, %68, %cst_18 {dimension_numbers = #tpu.dot_dimension_numbers<[1], [0], [0], [1], [0, 0, 1, 1], [], []>} : vector<8x16xf32>, vector<16x8xf32>, vector<8x8xf32> -> vector<8x8xf32>
    %70 = tpu.concatenate %60, %63, %66, %69 in 1 : vector<8x8xf32>, vector<8x8xf32>, vector<8x8xf32>, vector<8x8xf32> -> vector<8x32xf32>
    %71 = vector.extract_strided_slice %18 {offsets = [16, 0], sizes = [16, 32], strides = [1, 1]} : vector<32x32xf32> to vector<16x32xf32>
    %72 = vector.extract_strided_slice %56 {offsets = [32, 0], sizes = [8, 16], strides = [1, 1]} : vector<64x16xf32> to vector<8x16xf32>
    %73 = vector.extract_strided_slice %71 {offsets = [0, 0], sizes = [16, 8], strides = [1, 1]} : vector<16x32xf32> to vector<16x8xf32>
    %cst_19 = arith.constant dense<0.000000e+00> : vector<8x8xf32>
    %74 = tpu.matmul %72, %73, %cst_19 {dimension_numbers = #tpu.dot_dimension_numbers<[1], [0], [0], [1], [0, 0, 1, 1], [], []>} : vector<8x16xf32>, vector<16x8xf32>, vector<8x8xf32> -> vector<8x8xf32>
    %75 = vector.extract_strided_slice %56 {offsets = [40, 0], sizes = [8, 16], strides = [1, 1]} : vector<64x16xf32> to vector<8x16xf32>
    %76 = vector.extract_strided_slice %71 {offsets = [0, 8], sizes = [16, 8], strides = [1, 1]} : vector<16x32xf32> to vector<16x8xf32>
    %cst_20 = arith.constant dense<0.000000e+00> : vector<8x8xf32>
    %77 = tpu.matmul %75, %76, %cst_20 {dimension_numbers = #tpu.dot_dimension_numbers<[1], [0], [0], [1], [0, 0, 1, 1], [], []>} : vector<8x16xf32>, vector<16x8xf32>, vector<8x8xf32> -> vector<8x8xf32>
    %78 = vector.extract_strided_slice %56 {offsets = [48, 0], sizes = [8, 16], strides = [1, 1]} : vector<64x16xf32> to vector<8x16xf32>
    %79 = vector.extract_strided_slice %71 {offsets = [0, 16], sizes = [16, 8], strides = [1, 1]} : vector<16x32xf32> to vector<16x8xf32>
    %cst_21 = arith.constant dense<0.000000e+00> : vector<8x8xf32>
    %80 = tpu.matmul %78, %79, %cst_21 {dimension_numbers = #tpu.dot_dimension_numbers<[1], [0], [0], [1], [0, 0, 1, 1], [], []>} : vector<8x16xf32>, vector<16x8xf32>, vector<8x8xf32> -> vector<8x8xf32>
    %81 = vector.extract_strided_slice %56 {offsets = [56, 0], sizes = [8, 16], strides = [1, 1]} : vector<64x16xf32> to vector<8x16xf32>
    %82 = vector.extract_strided_slice %71 {offsets = [0, 24], sizes = [16, 8], strides = [1, 1]} : vector<16x32xf32> to vector<16x8xf32>
    %cst_22 = arith.constant dense<0.000000e+00> : vector<8x8xf32>
    %83 = tpu.matmul %81, %82, %cst_22 {dimension_numbers = #tpu.dot_dimension_numbers<[1], [0], [0], [1], [0, 0, 1, 1], [], []>} : vector<8x16xf32>, vector<16x8xf32>, vector<8x8xf32> -> vector<8x8xf32>
    %84 = tpu.concatenate %74, %77, %80, %83 in 1 : vector<8x8xf32>, vector<8x8xf32>, vector<8x8xf32>, vector<8x8xf32> -> vector<8x32xf32>
    %85 = tpu.concatenate %70, %84 in 0 : vector<8x32xf32>, vector<8x32xf32> -> vector<16x32xf32>
    %c0_23 = arith.constant 0 : index
    %c0_24 = arith.constant 0 : index
    %86 = vector.load %arg3[%c0_23, %c0_24] : memref<32x32xf32, #tpu.memory_space<vmem>>, vector<32x32xf32>
    %cst_25 = arith.constant dense<0.000000e+00> : vector<16x32xf32>
    %87 = tpu.matmul %85, %86, %cst_25 {dimension_numbers = #tpu.dot_dimension_numbers<[1], [0], [0], [1], [0, 0, 1, 1], [], []>} : vector<16x32xf32>, vector<32x32xf32>, vector<16x32xf32> -> vector<16x32xf32>
    %88 = vector.broadcast %5 : vector<1x32xf32> to vector<16x32xf32>
    %89 = arith.addf %87, %88 : vector<16x32xf32>
    %cst_26 = arith.constant dense<0.000000e+00> : vector<16xf32>
    %90 = vector.multi_reduction <add>, %89, %cst_26 [1] : vector<16x32xf32> to vector<16xf32>
    %91 = vector.shape_cast %90 : vector<16xf32> to vector<16x1xf32>
    %cst_27 = arith.constant 3.200000e+01 : f32
    %92 = vector.broadcast %cst_27 : f32 to vector<16x1xf32>
    %93 = arith.divf %91, %92 : vector<16x1xf32>
    %94 = vector.broadcast %93 : vector<16x1xf32> to vector<16x32xf32>
    %95 = arith.subf %89, %94 : vector<16x32xf32>
    %96 = arith.mulf %95, %95 : vector<16x32xf32>
    %cst_28 = arith.constant dense<0.000000e+00> : vector<16xf32>
    %97 = vector.multi_reduction <add>, %96, %cst_28 [1] : vector<16x32xf32> to vector<16xf32>
    %98 = vector.shape_cast %97 : vector<16xf32> to vector<16x1xf32>
    %cst_29 = arith.constant 3.200000e+01 : f32
    %99 = vector.broadcast %cst_29 : f32 to vector<16x1xf32>
    %100 = arith.divf %98, %99 : vector<16x1xf32>
    %101 = vector.broadcast %93 : vector<16x1xf32> to vector<16x32xf32>
    %102 = arith.subf %89, %101 : vector<16x32xf32>
    %cst_30 = arith.constant 9.99999974E-6 : f32
    %103 = vector.broadcast %cst_30 : f32 to vector<16x1xf32>
    %104 = arith.addf %100, %103 : vector<16x1xf32>
    %105 = math.rsqrt %104 : vector<16x1xf32>
    %106 = vector.broadcast %105 : vector<16x1xf32> to vector<16x32xf32>
    %107 = arith.mulf %102, %106 : vector<16x32xf32>
    %108 = vector.broadcast %6 : vector<1x32xf32> to vector<16x32xf32>
    %109 = arith.mulf %107, %108 : vector<16x32xf32>
    %110 = vector.broadcast %7 : vector<1x32xf32> to vector<16x32xf32>
    %111 = arith.addf %109, %110 : vector<16x32xf32>
    %c0_31 = arith.constant 0 : index
    %c0_32 = arith.constant 0 : index
    %112 = vector.load %arg5[%c0_31, %c0_32] : memref<16x32xf32, #tpu.memory_space<vmem>>, vector<16x32xf32>
    tpu.vector_store %arg5[%c0_31, %c0_32], %111 {strides = array<i32>} : memref<16x32xf32, #tpu.memory_space<vmem>>, vector<16x32xf32>,
    return
  }
  func.func @transform_0(%arg0: i32) -> (i32, i32) {
    %c0_i32 = arith.constant 0 : i32
    %c0_i32_0 = arith.constant 0 : i32
    %c0_i32_1 = arith.constant 0 : i32
    return %c0_i32, %c0_i32_0 : i32, i32
  }
  func.func @transform_1(%arg0: i32) -> (i32, i32) {
    %c0_i32 = arith.constant 0 : i32
    %c0_i32_0 = arith.constant 0 : i32
    %c0_i32_1 = arith.constant 0 : i32
    return %c0_i32, %c0_i32_0 : i32, i32
  }
  func.func @transform_2(%arg0: i32) -> (i32, i32) {
    %c0_i32 = arith.constant 0 : i32
    %c0_i32_0 = arith.constant 0 : i32
    %c0_i32_1 = arith.constant 0 : i32
    return %c0_i32, %c0_i32_0 : i32, i32
  }
  func.func @transform_3(%arg0: i32) -> (i32, i32) {
    %c0_i32 = arith.constant 0 : i32
    %c0_i32_0 = arith.constant 0 : i32
    %c0_i32_1 = arith.constant 0 : i32
    return %c0_i32, %c0_i32_0 : i32, i32
  }
  func.func @transform_4(%arg0: i32) -> (i32, i32) {
    %c0_i32 = arith.constant 0 : i32
    %c0_i32_0 = arith.constant 0 : i32
    %c0_i32_1 = arith.constant 0 : i32
    return %c0_i32, %c0_i32_0 : i32, i32
  }
}

</mosaic_0001>

<llo_original>
// kernel: tpu_custom_call.1
$region0: #{tpu_custom_call.1}
  #allocation0 [shape = 'u32[]', space=smem, size = 0x4, offset = 0x4, fixed_abs, tag = 'smem constant byte address 0x4 - core index']
  #allocation1 [shape = 'u32[72,128]{1,0:T(1,128)}', space=vmem, size = 0x9000, scoped, tag = 'internal scratch']
  %s0 = inlined_call_operand.vmem [shape: f32[48,32], index: 0, kind: input, shape index: {}]
  %s1 = inlined_call_operand.vmem [shape: f32[32,96], index: 1, kind: input, shape index: {}]
  %s2 = inlined_call_operand.vmem [shape: f32[32,32], index: 2, kind: input, shape index: {}]
  %s3 = inlined_call_operand.vmem [shape: f32[8,32], index: 3, kind: input, shape index: {}]
  %s4 = inlined_call_operand.hbm [shape: f32[16,32], index: 4, kind: output, shape index: {}]
  %s5 = sld [smem:[#allocation0]]
  $region26: #{tpu_custom_call.1} parent=0
    _
  %s7 = ssub.s32 1, %s5
  %s8 = scalar_select 0, %s7, %s5
  $region1: #{tpu_custom_call.1} parent=0
    #allocation2 [shape = 'u8[8192]{0}', space=vmem, size = 0x2000, scoped, tag = 'output window, operand 0, single buffered']
    #allocation3 [shape = 's32[1]{0}', space=sflag, size = 0x4, scoped, tag = 'scoped memory for tpu_custom_call.1']
    %9 = vsyncpa [#allocation3], 0
    // Predicated region
    $region2: #{tpu_custom_call.1} parent=1 // pred_check
      _
    $region3: #{tpu_custom_call.1} parent=1 // pred_check_branch
      %11 = sbr.rel (0) target = $region5
    $region4: #{tpu_custom_call.1} parent=1 // pred_region
      _
    $region5: #{tpu_custom_call.1} parent=1 // pred_fallthru
      _
    // Predicated region
    $region6: #{tpu_custom_call.1} parent=1 // pred_check
      _
    $region7: #{tpu_custom_call.1} parent=1 // pred_check_branch
      %13 = sbr.rel (0) target = $region9
    $region8: #{tpu_custom_call.1} parent=1 // pred_region
      _
    $region9: #{tpu_custom_call.1} parent=1 // pred_fallthru
      _
    // Predicated region
    $region10: #{tpu_custom_call.1} parent=1 // pred_check
      _
    $region11: #{tpu_custom_call.1} parent=1 // pred_check_branch
      %15 = sbr.rel (0) target = $region13
    $region12: #{tpu_custom_call.1} parent=1 // pred_region
      _
    $region13: #{tpu_custom_call.1} parent=1 // pred_fallthru
      _
    // Predicated region
    $region14: #{tpu_custom_call.1} parent=1 // pred_check
      _
    $region15: #{tpu_custom_call.1} parent=1 // pred_check_branch
      %17 = sbr.rel (0) target = $region17
    $region16: #{tpu_custom_call.1} parent=1 // pred_region
      _
    $region17: #{tpu_custom_call.1} parent=1 // pred_fallthru
      _
    %v18 = vld [vmem:[%s0] sm:$0xff]
    %v19 = vld [vmem:[%s0 + $0x8] sm:$0xff]
    %v20 = vld [vmem:[%s0 + $0x10] sm:$0xff]
    %v21 = vld [vmem:[%s0 + $0x18] sm:$0xff]
    %v22 = vld [vmem:[%s0 + $0x20] sm:$0xff]
    %v23 = vld [vmem:[%s0 + $0x28] sm:$0xff]
    %v24 = vld [vmem:[%s3] sm:$0xff]
    %v25 = vld [vmem:[%s1] sm:$0xff]
    %v26 = vld [vmem:[%s1 + $0x8] sm:$0xff]
    %v27 = vld [vmem:[%s1 + $0x10] sm:$0xff]
    %v28 = vld [vmem:[%s1 + $0x18] sm:$0xff]
    %vm29 = vcmask 261120
    %v31 = vsel %vm29, %v18, 0
    %v34 = vsel %vm29, %v19, 0
    %v37 = vsel %vm29, %v20, 0
    %v40 = vsel %vm29, %v21, 0
    %v43 = vsel %vm29, %v22, 0
    %v46 = vsel %vm29, %v23, 0
    %48 = vmatpush.msra.mxu0 0.0
    %49 = vmatpush.msra.mxu0 0.0
    %50 = vmatpush.msra.mxu0 0.0
    %51 = vmatpush.msra.mxu0 0.0
    %52 = vmatpush.msra.mxu0 0.0
    %53 = vmatpush.msra.mxu0 0.0
    %54 = vmatpush.msra.mxu0 0.0
    %55 = vmatpush.msra.mxu0 0.0
    %56 = vmatpush.msra.mxu0 0.0
    %57 = vmatpush.msra.mxu0 0.0
    %58 = vmatpush.msra.mxu0 0.0
    %59 = vmatpush.msra.mxu0 0.0
    %60 = vmatpush.msra.mxu0 %v28
    %61 = vmatpush.msra.mxu0 %v27
    %62 = vmatpush.msra.mxu0 %v26
    %63 = vmatpush.msra.mxu0 %v25
    %64 = vmatmul.f32.gmra.mxu0 %v31
    %v65 = vpop.f32.mrf.mxu0
    %v66 = vadd.f32 0.0, %v65
    %67 = vmatmul.f32.gmra.mxu0 %v34
    %v68 = vpop.f32.mrf.mxu0
    %v69 = vadd.f32 0.0, %v68
    %70 = vmatmul.f32.gmra.mxu0 %v37
    %v71 = vpop.f32.mrf.mxu0
    %v72 = vadd.f32 0.0, %v71
    %73 = vmatmul.f32.gmra.mxu0 %v40
    %v74 = vpop.f32.mrf.mxu0
    %v75 = vadd.f32 0.0, %v74
    %76 = vmatmul.f32.gmra.mxu0 %v43
    %v77 = vpop.f32.mrf.mxu0
    %v78 = vadd.f32 0.0, %v77
    %79 = vmatmul.f32.gmra.mxu0 %v46
    %v80 = vpop.f32.mrf.mxu0
    %v81 = vadd.f32 0.0, %v80
    %82 = vdwg.mxu0
    %v83 = vperm.slane %v24, 0
    %v84 = vadd.f32 %v66, %v83
    %v85 = vadd.f32 %v69, %v83
    %v86 = vperm.slane %v24, 1
    %88 = vrot.lane.b32.xlu0 %v86, 32
    %v89 = vpop.permute.xlu0 %88
    %v91 = vadd.f32 %v72, %v89
    %v92 = vadd.f32 %v75, %v89
    %v93 = vadd.f32 %v78, %v89
    %v94 = vadd.f32 %v81, %v89
    %v95 = vperm.slane %v24, 2
    %97 = vrot.lane.b32.xlu0 %v95, 64
    %v98 = vpop.permute.xlu0 %97
    %v100 = vadd.f32 %v72, %v98
    %v101 = vadd.f32 %v75, %v98
    %v102 = vadd.f32 %v78, %v98
    %v103 = vadd.f32 %v81, %v98
    %106 = vrot.lane.b32.xlu0 %v91, 96
    %v107 = vpop.permute.xlu0 %106
    %108 = vrot.lane.b32.xlu0 %v92, 96
    %v109 = vpop.permute.xlu0 %108
    %vm110 = vcmask 64512
    %v112 = vsel %vm110, %v84, 0
    %v114 = vsel %vm110, %v107, 0
    %v116 = vsel %vm110, %v109, 0
    %118 = vmatpush.xpose.msra.mxu0 0.0
    %119 = vmatpush.xpose.msra.mxu0 0.0
    %120 = vmatpush.xpose.msra.mxu0 0.0
    %121 = vmatpush.xpose.msra.mxu0 0.0
    %122 = vmatpush.xpose.msra.mxu0 0.0
    %123 = vmatpush.xpose.msra.mxu0 0.0
    %124 = vmatpush.xpose.msra.mxu0 0.0
    %125 = vmatpush.xpose.msra.mxu0 0.0
    %126 = vmatpush.xpose.msra.mxu0 0.0
    %127 = vmatpush.xpose.msra.mxu0 0.0
    %128 = vmatpush.xpose.msra.mxu0 0.0
    %129 = vmatpush.xpose.msra.mxu0 0.0
    %130 = vmatpush.xpose.msra.mxu0 0.0
    %131 = vmatpush.xpose.msra.mxu0 0.0
    %132 = vmatpush.xpose.msra.mxu0 %v116
    %133 = vmatpush.xpose.msra.mxu0 %v114
    %134 = vmatmul.f32.gmra.mxu0 %v112
    %v135 = vpop.f32.mrf.mxu0
    %v136 = vadd.f32 0.0, %v135
    %137 = vdwg.mxu0
    %138 = vrot.lane.b32.xlu0 %v84, 120
    %v139 = vpop.permute.xlu0 %138
    %140 = vrot.lane.b32.xlu0 %v91, 88
    %v141 = vpop.permute.xlu0 %140
    %142 = vrot.lane.b32.xlu0 %v92, 88
    %v143 = vpop.permute.xlu0 %142
    %v144 = vsel %vm110, %v139, 0
    %v146 = vsel %vm110, %v141, 0
    %v148 = vsel %vm110, %v143, 0
    %150 = vmatpush.xpose.msra.mxu0 0.0
    %151 = vmatpush.xpose.msra.mxu0 0.0
    %152 = vmatpush.xpose.msra.mxu0 0.0
    %153 = vmatpush.xpose.msra.mxu0 0.0
    %154 = vmatpush.xpose.msra.mxu0 0.0
    %155 = vmatpush.xpose.msra.mxu0 0.0
    %156 = vmatpush.xpose.msra.mxu0 0.0
    %157 = vmatpush.xpose.msra.mxu0 0.0
    %158 = vmatpush.xpose.msra.mxu0 0.0
    %159 = vmatpush.xpose.msra.mxu0 0.0
    %160 = vmatpush.xpose.msra.mxu0 0.0
    %161 = vmatpush.xpose.msra.mxu0 0.0
    %162 = vmatpush.xpose.msra.mxu0 0.0
    %163 = vmatpush.xpose.msra.mxu0 0.0
    %164 = vmatpush.xpose.msra.mxu0 %v148
    %165 = vmatpush.xpose.msra.mxu0 %v146
    %166 = vmatmul.f32.gmra.mxu0 %v144
    %v167 = vpop.f32.mrf.mxu0
    %v168 = vadd.f32 0.0, %v167
    %169 = vdwg.mxu0
    %170 = vrot.lane.b32.xlu0 %v84, 112
    %v171 = vpop.permute.xlu0 %170
    %172 = vrot.lane.b32.xlu0 %v91, 80
    %v173 = vpop.permute.xlu0 %172
    %174 = vrot.lane.b32.xlu0 %v92, 80
    %v175 = vpop.permute.xlu0 %174
    %v176 = vsel %vm110, %v171, 0
    %v178 = vsel %vm110, %v173, 0
    %v180 = vsel %vm110, %v175, 0
    %182 = vmatpush.xpose.msra.mxu0 0.0
    %183 = vmatpush.xpose.msra.mxu0 0.0
    %184 = vmatpush.xpose.msra.mxu0 0.0
    %185 = vmatpush.xpose.msra.mxu0 0.0
    %186 = vmatpush.xpose.msra.mxu0 0.0
    %187 = vmatpush.xpose.msra.mxu0 0.0
    %188 = vmatpush.xpose.msra.mxu0 0.0
    %189 = vmatpush.xpose.msra.mxu0 0.0
    %190 = vmatpush.xpose.msra.mxu0 0.0
    %191 = vmatpush.xpose.msra.mxu0 0.0
    %192 = vmatpush.xpose.msra.mxu0 0.0
    %193 = vmatpush.xpose.msra.mxu0 0.0
    %194 = vmatpush.xpose.msra.mxu0 0.0
    %195 = vmatpush.xpose.msra.mxu0 0.0
    %196 = vmatpush.xpose.msra.mxu0 %v180
    %197 = vmatpush.xpose.msra.mxu0 %v178
    %198 = vmatmul.f32.gmra.mxu0 %v176
    %v199 = vpop.f32.mrf.mxu0
    %v200 = vadd.f32 0.0, %v199
    %201 = vdwg.mxu0
    %202 = vrot.lane.b32.xlu0 %v84, 104
    %v203 = vpop.permute.xlu0 %202
    %204 = vrot.lane.b32.xlu0 %v91, 72
    %v205 = vpop.permute.xlu0 %204
    %206 = vrot.lane.b32.xlu0 %v92, 72
    %v207 = vpop.permute.xlu0 %206
    %v208 = vsel %vm110, %v203, 0
    %v210 = vsel %vm110, %v205, 0
    %v212 = vsel %vm110, %v207, 0
    %214 = vmatpush.xpose.msra.mxu0 0.0
    %215 = vmatpush.xpose.msra.mxu0 0.0
    %216 = vmatpush.xpose.msra.mxu0 0.0
    %217 = vmatpush.xpose.msra.mxu0 0.0
    %218 = vmatpush.xpose.msra.mxu0 0.0
    %219 = vmatpush.xpose.msra.mxu0 0.0
    %220 = vmatpush.xpose.msra.mxu0 0.0
    %221 = vmatpush.xpose.msra.mxu0 0.0
    %222 = vmatpush.xpose.msra.mxu0 0.0
    %223 = vmatpush.xpose.msra.mxu0 0.0
    %224 = vmatpush.xpose.msra.mxu0 0.0
    %225 = vmatpush.xpose.msra.mxu0 0.0
    %226 = vmatpush.xpose.msra.mxu0 0.0
    %227 = vmatpush.xpose.msra.mxu0 0.0
    %228 = vmatpush.xpose.msra.mxu0 %v212
    %229 = vmatpush.xpose.msra.mxu0 %v210
    %230 = vmatmul.f32.gmra.mxu0 %v208
    %v231 = vpop.f32.mrf.mxu0
    %v232 = vadd.f32 0.0, %v231
    %233 = vdwg.mxu0
    %236 = vrot.lane.b32.xlu0 %v93, 96
    %v237 = vpop.permute.xlu0 %236
    %238 = vrot.lane.b32.xlu0 %v94, 96
    %v239 = vpop.permute.xlu0 %238
    %v241 = vsel %vm110, %v85, 0
    %v243 = vsel %vm110, %v237, 0
    %v245 = vsel %vm110, %v239, 0
    %247 = vmatpush.xpose.msra.mxu0 0.0
    %248 = vmatpush.xpose.msra.mxu0 0.0
    %249 = vmatpush.xpose.msra.mxu0 0.0
    %250 = vmatpush.xpose.msra.mxu0 0.0
    %251 = vmatpush.xpose.msra.mxu0 0.0
    %252 = vmatpush.xpose.msra.mxu0 0.0
    %253 = vmatpush.xpose.msra.mxu0 0.0
    %254 = vmatpush.xpose.msra.mxu0 0.0
    %255 = vmatpush.xpose.msra.mxu0 0.0
    %256 = vmatpush.xpose.msra.mxu0 0.0
    %257 = vmatpush.xpose.msra.mxu0 0.0
    %258 = vmatpush.xpose.msra.mxu0 0.0
    %259 = vmatpush.xpose.msra.mxu0 0.0
    %260 = vmatpush.xpose.msra.mxu0 0.0
    %261 = vmatpush.xpose.msra.mxu0 %v245
    %262 = vmatpush.xpose.msra.mxu0 %v243
    %263 = vmatmul.f32.gmra.mxu0 %v241
    %v264 = vpop.f32.mrf.mxu0
    %v265 = vadd.f32 0.0, %v264
    %266 = vdwg.mxu0
    %267 = vrot.lane.b32.xlu0 %v85, 120
    %v268 = vpop.permute.xlu0 %267
    %269 = vrot.lane.b32.xlu0 %v93, 88
    %v270 = vpop.permute.xlu0 %269
    %271 = vrot.lane.b32.xlu0 %v94, 88
    %v272 = vpop.permute.xlu0 %271
    %v273 = vsel %vm110, %v268, 0
    %v275 = vsel %vm110, %v270, 0
    %v277 = vsel %vm110, %v272, 0
    %279 = vmatpush.xpose.msra.mxu0 0.0
    %280 = vmatpush.xpose.msra.mxu0 0.0
    %281 = vmatpush.xpose.msra.mxu0 0.0
    %282 = vmatpush.xpose.msra.mxu0 0.0
    %283 = vmatpush.xpose.msra.mxu0 0.0
    %284 = vmatpush.xpose.msra.mxu0 0.0
    %285 = vmatpush.xpose.msra.mxu0 0.0
    %286 = vmatpush.xpose.msra.mxu0 0.0
    %287 = vmatpush.xpose.msra.mxu0 0.0
    %288 = vmatpush.xpose.msra.mxu0 0.0
    %289 = vmatpush.xpose.msra.mxu0 0.0
    %290 = vmatpush.xpose.msra.mxu0 0.0
    %291 = vmatpush.xpose.msra.mxu0 0.0
    %292 = vmatpush.xpose.msra.mxu0 0.0
    %293 = vmatpush.xpose.msra.mxu0 %v277
    %294 = vmatpush.xpose.msra.mxu0 %v275
    %295 = vmatmul.f32.gmra.mxu0 %v273
    %v296 = vpop.f32.mrf.mxu0
    %v297 = vadd.f32 0.0, %v296
    %298 = vdwg.mxu0
    %299 = vrot.lane.b32.xlu0 %v85, 112
    %v300 = vpop.permute.xlu0 %299
    %301 = vrot.lane.b32.xlu0 %v93, 80
    %v302 = vpop.permute.xlu0 %301
    %303 = vrot.lane.b32.xlu0 %v94, 80
    %v304 = vpop.permute.xlu0 %303
    %v305 = vsel %vm110, %v300, 0
    %v307 = vsel %vm110, %v302, 0
    %v309 = vsel %vm110, %v304, 0
    %311 = vmatpush.xpose.msra.mxu0 0.0
    %312 = vmatpush.xpose.msra.mxu0 0.0
    %313 = vmatpush.xpose.msra.mxu0 0.0
    %314 = vmatpush.xpose.msra.mxu0 0.0
    %315 = vmatpush.xpose.msra.mxu0 0.0
    %316 = vmatpush.xpose.msra.mxu0 0.0
    %317 = vmatpush.xpose.msra.mxu0 0.0
    %318 = vmatpush.xpose.msra.mxu0 0.0
    %319 = vmatpush.xpose.msra.mxu0 0.0
    %320 = vmatpush.xpose.msra.mxu0 0.0
    %321 = vmatpush.xpose.msra.mxu0 0.0
    %322 = vmatpush.xpose.msra.mxu0 0.0
    %323 = vmatpush.xpose.msra.mxu0 0.0
    %324 = vmatpush.xpose.msra.mxu0 0.0
    %325 = vmatpush.xpose.msra.mxu0 %v309
    %326 = vmatpush.xpose.msra.mxu0 %v307
    %327 = vmatmul.f32.gmra.mxu0 %v305
    %v328 = vpop.f32.mrf.mxu0
    %v329 = vadd.f32 0.0, %v328
    %330 = vdwg.mxu0
    %331 = vrot.lane.b32.xlu0 %v85, 104
    %v332 = vpop.permute.xlu0 %331
    %333 = vrot.lane.b32.xlu0 %v93, 72
    %v334 = vpop.permute.xlu0 %333
    %335 = vrot.lane.b32.xlu0 %v94, 72
    %v336 = vpop.permute.xlu0 %335
    %v337 = vsel %vm110, %v332, 0
    %v339 = vsel %vm110, %v334, 0
    %v341 = vsel %vm110, %v336, 0
    %343 = vmatpush.xpose.msra.mxu0 0.0
    %344 = vmatpush.xpose.msra.mxu0 0.0
    %345 = vmatpush.xpose.msra.mxu0 0.0
    %346 = vmatpush.xpose.msra.mxu0 0.0
    %347 = vmatpush.xpose.msra.mxu0 0.0
    %348 = vmatpush.xpose.msra.mxu0 0.0
    %349 = vmatpush.xpose.msra.mxu0 0.0
    %350 = vmatpush.xpose.msra.mxu0 0.0
    %351 = vmatpush.xpose.msra.mxu0 0.0
    %352 = vmatpush.xpose.msra.mxu0 0.0
    %353 = vmatpush.xpose.msra.mxu0 0.0
    %354 = vmatpush.xpose.msra.mxu0 0.0
    %355 = vmatpush.xpose.msra.mxu0 0.0
    %356 = vmatpush.xpose.msra.mxu0 0.0
    %357 = vmatpush.xpose.msra.mxu0 %v341
    %358 = vmatpush.xpose.msra.mxu0 %v339
    %359 = vmatmul.f32.gmra.mxu0 %v337
    %v360 = vpop.f32.mrf.mxu0
    %v361 = vadd.f32 0.0, %v360
    %362 = vdwg.mxu0
    %vm363 = vcmask 130048
    %v364 = vsel %vm363, %v136, -inf
    %365 = vmax.xlane.f32.xlu0 %v364
    %v366 = vpop.xlane.xlu0 %365
    %v367 = vsel %vm363, %v168, -inf
    %368 = vmax.xlane.f32.xlu0 %v367
    %v369 = vpop.xlane.xlu0 %368
    %v370 = vsel %vm363, %v200, -inf
    %371 = vmax.xlane.f32.xlu0 %v370
    %v372 = vpop.xlane.xlu0 %371
    %v373 = vsel %vm363, %v232, -inf
    %374 = vmax.xlane.f32.xlu0 %v373
    %v375 = vpop.xlane.xlu0 %374
    %v376 = vsel %vm363, %v265, -inf
    %377 = vmax.xlane.f32.xlu0 %v376
    %v378 = vpop.xlane.xlu0 %377
    %v379 = vsel %vm363, %v297, -inf
    %380 = vmax.xlane.f32.xlu0 %v379
    %v381 = vpop.xlane.xlu0 %380
    %v382 = vsel %vm363, %v329, -inf
    %383 = vmax.xlane.f32.xlu0 %v382
    %v384 = vpop.xlane.xlu0 %383
    %v385 = vsel %vm363, %v361, -inf
    %386 = vmax.xlane.f32.xlu0 %v385
    %v387 = vpop.xlane.xlu0 %386
    %v388 = vsub.f32 %v136, %v366
    %v389 = vsub.f32 %v168, %v369
    %v390 = vsub.f32 %v200, %v372
    %v391 = vsub.f32 %v232, %v375
    %v392 = vsub.f32 %v265, %v378
    %v393 = vsub.f32 %v297, %v381
    %v394 = vsub.f32 %v329, %v384
    %v395 = vsub.f32 %v361, %v387
    %v396 = vmul.f32 %v388, 1.442695
    %v397 = vpow.pop %v396
    %v398 = vmul.f32 %v389, 1.442695
    %v399 = vpow.pop %v398
    %v400 = vmul.f32 %v390, 1.442695
    %v401 = vpow.pop %v400
    %v402 = vmul.f32 %v391, 1.442695
    %v403 = vpow.pop %v402
    %v404 = vmul.f32 %v392, 1.442695
    %v405 = vpow.pop %v404
    %v406 = vmul.f32 %v393, 1.442695
    %v407 = vpow.pop %v406
    %v408 = vmul.f32 %v394, 1.442695
    %v409 = vpow.pop %v408
    %v410 = vmul.f32 %v395, 1.442695
    %v411 = vpow.pop %v410
    %v412 = vsel %vm363, %v397, 0.0
    %413 = vadd.xlane.f32.xlu0 %v412
    %v414 = vpop.xlane.xlu0 %413
    %v415 = vsel %vm363, %v399, 0.0
    %416 = vadd.xlane.f32.xlu0 %v415
    %v417 = vpop.xlane.xlu0 %416
    %v418 = vsel %vm363, %v401, 0.0
    %419 = vadd.xlane.f32.xlu0 %v418
    %v420 = vpop.xlane.xlu0 %419
    %v421 = vsel %vm363, %v403, 0.0
    %422 = vadd.xlane.f32.xlu0 %v421
    %v423 = vpop.xlane.xlu0 %422
    %v424 = vsel %vm363, %v405, 0.0
    %425 = vadd.xlane.f32.xlu0 %v424
    %v426 = vpop.xlane.xlu0 %425
    %v427 = vsel %vm363, %v407, 0.0
    %428 = vadd.xlane.f32.xlu0 %v427
    %v429 = vpop.xlane.xlu0 %428
    %v430 = vsel %vm363, %v409, 0.0
    %431 = vadd.xlane.f32.xlu0 %v430
    %v432 = vpop.xlane.xlu0 %431
    %v433 = vsel %vm363, %v411, 0.0
    %434 = vadd.xlane.f32.xlu0 %v433
    %v435 = vpop.xlane.xlu0 %434
    %v436 = vrcp.pop %v414
    %v437 = vmul.f32 %v414, %v436
    %v438 = vsub.f32 1.0, %v437
    %v439 = vmul.f32 %v436, %v438
    %v440 = vadd.f32 %v436, %v439
    %vm441 = vweird.f32 %v414
    %vm442 = vweird.f32 %v436
    %vm443 = vmor %vm441, %vm442
    %v444 = vsel %vm443, %v436, %v440
    %v445 = vand.u32 2147483647, %v414
    %vm446 = vcmp.eq.f32.partialorder %v445, 8.507059e+37
    %v447 = vand.u32 %v414, 2147483648
    %v448 = vor.u32 1.1754944e-38, %v447
    %v449 = vsel %vm446, %v448, %v444
    %v450 = vmul.f32 %v397, %v449
    %v451 = vrcp.pop %v417
    %v452 = vmul.f32 %v417, %v451
    %v453 = vsub.f32 1.0, %v452
    %v454 = vmul.f32 %v451, %v453
    %v455 = vadd.f32 %v451, %v454
    %vm456 = vweird.f32 %v417
    %vm457 = vweird.f32 %v451
    %vm458 = vmor %vm456, %vm457
    %v459 = vsel %vm458, %v451, %v455
    %v460 = vand.u32 2147483647, %v417
    %vm461 = vcmp.eq.f32.partialorder %v460, 8.507059e+37
    %v462 = vand.u32 %v417, 2147483648
    %v463 = vor.u32 1.1754944e-38, %v462
    %v464 = vsel %vm461, %v463, %v459
    %v465 = vmul.f32 %v399, %v464
    %v466 = vrcp.pop %v420
    %v467 = vmul.f32 %v420, %v466
    %v468 = vsub.f32 1.0, %v467
    %v469 = vmul.f32 %v466, %v468
    %v470 = vadd.f32 %v466, %v469
    %vm471 = vweird.f32 %v420
    %vm472 = vweird.f32 %v466
    %vm473 = vmor %vm471, %vm472
    %v474 = vsel %vm473, %v466, %v470
    %v475 = vand.u32 2147483647, %v420
    %vm476 = vcmp.eq.f32.partialorder %v475, 8.507059e+37
    %v477 = vand.u32 %v420, 2147483648
    %v478 = vor.u32 1.1754944e-38, %v477
    %v479 = vsel %vm476, %v478, %v474
    %v480 = vmul.f32 %v401, %v479
    %v481 = vrcp.pop %v423
    %v482 = vmul.f32 %v423, %v481
    %v483 = vsub.f32 1.0, %v482
    %v484 = vmul.f32 %v481, %v483
    %v485 = vadd.f32 %v481, %v484
    %vm486 = vweird.f32 %v423
    %vm487 = vweird.f32 %v481
    %vm488 = vmor %vm486, %vm487
    %v489 = vsel %vm488, %v481, %v485
    %v490 = vand.u32 2147483647, %v423
    %vm491 = vcmp.eq.f32.partialorder %v490, 8.507059e+37
    %v492 = vand.u32 %v423, 2147483648
    %v493 = vor.u32 1.1754944e-38, %v492
    %v494 = vsel %vm491, %v493, %v489
    %v495 = vmul.f32 %v403, %v494
    %v496 = vrcp.pop %v426
    %v497 = vmul.f32 %v426, %v496
    %v498 = vsub.f32 1.0, %v497
    %v499 = vmul.f32 %v496, %v498
    %v500 = vadd.f32 %v496, %v499
    %vm501 = vweird.f32 %v426
    %vm502 = vweird.f32 %v496
    %vm503 = vmor %vm501, %vm502
    %v504 = vsel %vm503, %v496, %v500
    %v505 = vand.u32 2147483647, %v426
    %vm506 = vcmp.eq.f32.partialorder %v505, 8.507059e+37
    %v507 = vand.u32 %v426, 2147483648
    %v508 = vor.u32 1.1754944e-38, %v507
    %v509 = vsel %vm506, %v508, %v504
    %v510 = vmul.f32 %v405, %v509
    %v511 = vrcp.pop %v429
    %v512 = vmul.f32 %v429, %v511
    %v513 = vsub.f32 1.0, %v512
    %v514 = vmul.f32 %v511, %v513
    %v515 = vadd.f32 %v511, %v514
    %vm516 = vweird.f32 %v429
    %vm517 = vweird.f32 %v511
    %vm518 = vmor %vm516, %vm517
    %v519 = vsel %vm518, %v511, %v515
    %v520 = vand.u32 2147483647, %v429
    %vm521 = vcmp.eq.f32.partialorder %v520, 8.507059e+37
    %v522 = vand.u32 %v429, 2147483648
    %v523 = vor.u32 1.1754944e-38, %v522
    %v524 = vsel %vm521, %v523, %v519
    %v525 = vmul.f32 %v407, %v524
    %v526 = vrcp.pop %v432
    %v527 = vmul.f32 %v432, %v526
    %v528 = vsub.f32 1.0, %v527
    %v529 = vmul.f32 %v526, %v528
    %v530 = vadd.f32 %v526, %v529
    %vm531 = vweird.f32 %v432
    %vm532 = vweird.f32 %v526
    %vm533 = vmor %vm531, %vm532
    %v534 = vsel %vm533, %v526, %v530
    %v535 = vand.u32 2147483647, %v432
    %vm536 = vcmp.eq.f32.partialorder %v535, 8.507059e+37
    %v537 = vand.u32 %v432, 2147483648
    %v538 = vor.u32 1.1754944e-38, %v537
    %v539 = vsel %vm536, %v538, %v534
    %v540 = vmul.f32 %v409, %v539
    %v541 = vrcp.pop %v435
    %v542 = vmul.f32 %v435, %v541
    %v543 = vsub.f32 1.0, %v542
    %v544 = vmul.f32 %v541, %v543
    %v545 = vadd.f32 %v541, %v544
    %vm546 = vweird.f32 %v435
    %vm547 = vweird.f32 %v541
    %vm548 = vmor %vm546, %vm547
    %v549 = vsel %vm548, %v541, %v545
    %v550 = vand.u32 2147483647, %v435
    %vm551 = vcmp.eq.f32.partialorder %v550, 8.507059e+37
    %v552 = vand.u32 %v435, 2147483648
    %v553 = vor.u32 1.1754944e-38, %v552
    %v554 = vsel %vm551, %v553, %v549
    %v555 = vmul.f32 %v411, %v554
    %558 = vrot.lane.b32.xlu0 %v100, 64
    %v559 = vpop.permute.xlu0 %558
    %560 = vrot.lane.b32.xlu0 %v101, 64
    %v561 = vpop.permute.xlu0 %560
    %v565 = vsel %vm363, %v450, 0
    %567 = vmatpush.msra.mxu0 0.0
    %568 = vmatpush.msra.mxu0 0.0
    %569 = vmatpush.msra.mxu0 0.0
    %570 = vmatpush.msra.mxu0 0.0
    %571 = vmatpush.msra.mxu0 0.0
    %572 = vmatpush.msra.mxu0 0.0
    %573 = vmatpush.msra.mxu0 0.0
    %574 = vmatpush.msra.mxu0 0.0
    %575 = vmatpush.msra.mxu0 0.0
    %576 = vmatpush.msra.mxu0 0.0
    %577 = vmatpush.msra.mxu0 0.0
    %578 = vmatpush.msra.mxu0 0.0
    %579 = vmatpush.msra.mxu0 0.0
    %580 = vmatpush.msra.mxu0 0.0
    %581 = vmatpush.msra.mxu0 %v561
    %582 = vmatpush.msra.mxu0 %v559
    %583 = vmatmul.f32.gmra.mxu0 %v565
    %v584 = vpop.f32.mrf.mxu0
    %v585 = vadd.f32 0.0, %v584
    %586 = vdwg.mxu0
    %587 = vrot.lane.b32.xlu0 %v100, 56
    %v588 = vpop.permute.xlu0 %587
    %589 = vrot.lane.b32.xlu0 %v101, 56
    %v590 = vpop.permute.xlu0 %589
    %v594 = vsel %vm363, %v465, 0
    %596 = vmatpush.msra.mxu0 0.0
    %597 = vmatpush.msra.mxu0 0.0
    %598 = vmatpush.msra.mxu0 0.0
    %599 = vmatpush.msra.mxu0 0.0
    %600 = vmatpush.msra.mxu0 0.0
    %601 = vmatpush.msra.mxu0 0.0
    %602 = vmatpush.msra.mxu0 0.0
    %603 = vmatpush.msra.mxu0 0.0
    %604 = vmatpush.msra.mxu0 0.0
    %605 = vmatpush.msra.mxu0 0.0
    %606 = vmatpush.msra.mxu0 0.0
    %607 = vmatpush.msra.mxu0 0.0
    %608 = vmatpush.msra.mxu0 0.0
    %609 = vmatpush.msra.mxu0 0.0
    %610 = vmatpush.msra.mxu0 %v590
    %611 = vmatpush.msra.mxu0 %v588
    %612 = vmatmul.f32.gmra.mxu0 %v594
    %v613 = vpop.f32.mrf.mxu0
    %v614 = vadd.f32 0.0, %v613
    %615 = vdwg.mxu0
    %616 = vrot.lane.b32.xlu0 %v100, 48
    %v617 = vpop.permute.xlu0 %616
    %618 = vrot.lane.b32.xlu0 %v101, 48
    %v619 = vpop.permute.xlu0 %618
    %v623 = vsel %vm363, %v480, 0
    %625 = vmatpush.msra.mxu0 0.0
    %626 = vmatpush.msra.mxu0 0.0
    %627 = vmatpush.msra.mxu0 0.0
    %628 = vmatpush.msra.mxu0 0.0
    %629 = vmatpush.msra.mxu0 0.0
    %630 = vmatpush.msra.mxu0 0.0
    %631 = vmatpush.msra.mxu0 0.0
    %632 = vmatpush.msra.mxu0 0.0
    %633 = vmatpush.msra.mxu0 0.0
    %634 = vmatpush.msra.mxu0 0.0
    %635 = vmatpush.msra.mxu0 0.0
    %636 = vmatpush.msra.mxu0 0.0
    %637 = vmatpush.msra.mxu0 0.0
    %638 = vmatpush.msra.mxu0 0.0
    %639 = vmatpush.msra.mxu0 %v619
    %640 = vmatpush.msra.mxu0 %v617
    %641 = vmatmul.f32.gmra.mxu0 %v623
    %v642 = vpop.f32.mrf.mxu0
    %v643 = vadd.f32 0.0, %v642
    %644 = vdwg.mxu0
    %645 = vrot.lane.b32.xlu0 %v100, 40
    %v646 = vpop.permute.xlu0 %645
    %647 = vrot.lane.b32.xlu0 %v101, 40
    %v648 = vpop.permute.xlu0 %647
    %v652 = vsel %vm363, %v495, 0
    %654 = vmatpush.msra.mxu0 0.0
    %655 = vmatpush.msra.mxu0 0.0
    %656 = vmatpush.msra.mxu0 0.0
    %657 = vmatpush.msra.mxu0 0.0
    %658 = vmatpush.msra.mxu0 0.0
    %659 = vmatpush.msra.mxu0 0.0
    %660 = vmatpush.msra.mxu0 0.0
    %661 = vmatpush.msra.mxu0 0.0
    %662 = vmatpush.msra.mxu0 0.0
    %663 = vmatpush.msra.mxu0 0.0
    %664 = vmatpush.msra.mxu0 0.0
    %665 = vmatpush.msra.mxu0 0.0
    %666 = vmatpush.msra.mxu0 0.0
    %667 = vmatpush.msra.mxu0 0.0
    %668 = vmatpush.msra.mxu0 %v648
    %669 = vmatpush.msra.mxu0 %v646
    %670 = vmatmul.f32.gmra.mxu0 %v652
    %v671 = vpop.f32.mrf.mxu0
    %v672 = vadd.f32 0.0, %v671
    %673 = vdwg.mxu0
    %675 = vrot.lane.b32.xlu0 %v614, 8
    %v676 = vpop.permute.xlu0 %675
    %679 = vrot.lane.b32.xlu0 %v643, 16
    %v680 = vpop.permute.xlu0 %679
    %683 = vrot.lane.b32.xlu0 %v672, 24
    %v684 = vpop.permute.xlu0 %683
    %v686 = vsel %vm110, %v585, %v676
    %v687 = vsel %vm363, %v686, %v680
    %vm688 = vcmask 195584
    %v689 = vsel %vm688, %v687, %v684
    %692 = vrot.lane.b32.xlu0 %v102, 64
    %v693 = vpop.permute.xlu0 %692
    %694 = vrot.lane.b32.xlu0 %v103, 64
    %v695 = vpop.permute.xlu0 %694
    %v699 = vsel %vm363, %v510, 0
    %701 = vmatpush.msra.mxu0 0.0
    %702 = vmatpush.msra.mxu0 0.0
    %703 = vmatpush.msra.mxu0 0.0
    %704 = vmatpush.msra.mxu0 0.0
    %705 = vmatpush.msra.mxu0 0.0
    %706 = vmatpush.msra.mxu0 0.0
    %707 = vmatpush.msra.mxu0 0.0
    %708 = vmatpush.msra.mxu0 0.0
    %709 = vmatpush.msra.mxu0 0.0
    %710 = vmatpush.msra.mxu0 0.0
    %711 = vmatpush.msra.mxu0 0.0
    %712 = vmatpush.msra.mxu0 0.0
    %713 = vmatpush.msra.mxu0 0.0
    %714 = vmatpush.msra.mxu0 0.0
    %715 = vmatpush.msra.mxu0 %v695
    %716 = vmatpush.msra.mxu0 %v693
    %717 = vmatmul.f32.gmra.mxu0 %v699
    %v718 = vpop.f32.mrf.mxu0
    %v719 = vadd.f32 0.0, %v718
    %720 = vdwg.mxu0
    %721 = vrot.lane.b32.xlu0 %v102, 56
    %v722 = vpop.permute.xlu0 %721
    %723 = vrot.lane.b32.xlu0 %v103, 56
    %v724 = vpop.permute.xlu0 %723
    %v728 = vsel %vm363, %v525, 0
    %730 = vmatpush.msra.mxu0 0.0
    %731 = vmatpush.msra.mxu0 0.0
    %732 = vmatpush.msra.mxu0 0.0
    %733 = vmatpush.msra.mxu0 0.0
    %734 = vmatpush.msra.mxu0 0.0
    %735 = vmatpush.msra.mxu0 0.0
    %736 = vmatpush.msra.mxu0 0.0
    %737 = vmatpush.msra.mxu0 0.0
    %738 = vmatpush.msra.mxu0 0.0
    %739 = vmatpush.msra.mxu0 0.0
    %740 = vmatpush.msra.mxu0 0.0
    %741 = vmatpush.msra.mxu0 0.0
    %742 = vmatpush.msra.mxu0 0.0
    %743 = vmatpush.msra.mxu0 0.0
    %744 = vmatpush.msra.mxu0 %v724
    %745 = vmatpush.msra.mxu0 %v722
    %746 = vmatmul.f32.gmra.mxu0 %v728
    %v747 = vpop.f32.mrf.mxu0
    %v748 = vadd.f32 0.0, %v747
    %749 = vdwg.mxu0
    %750 = vrot.lane.b32.xlu0 %v102, 48
    %v751 = vpop.permute.xlu0 %750
    %752 = vrot.lane.b32.xlu0 %v103, 48
    %v753 = vpop.permute.xlu0 %752
    %v757 = vsel %vm363, %v540, 0
    %759 = vmatpush.msra.mxu0 0.0
    %760 = vmatpush.msra.mxu0 0.0
    %761 = vmatpush.msra.mxu0 0.0
    %762 = vmatpush.msra.mxu0 0.0
    %763 = vmatpush.msra.mxu0 0.0
    %764 = vmatpush.msra.mxu0 0.0
    %765 = vmatpush.msra.mxu0 0.0
    %766 = vmatpush.msra.mxu0 0.0
    %767 = vmatpush.msra.mxu0 0.0
    %768 = vmatpush.msra.mxu0 0.0
    %769 = vmatpush.msra.mxu0 0.0
    %770 = vmatpush.msra.mxu0 0.0
    %771 = vmatpush.msra.mxu0 0.0
    %772 = vmatpush.msra.mxu0 0.0
    %773 = vmatpush.msra.mxu0 %v753
    %774 = vmatpush.msra.mxu0 %v751
    %775 = vmatmul.f32.gmra.mxu0 %v757
    %v776 = vpop.f32.mrf.mxu0
    %v777 = vadd.f32 0.0, %v776
    %778 = vdwg.mxu0
    %779 = vrot.lane.b32.xlu0 %v102, 40
    %v780 = vpop.permute.xlu0 %779
    %781 = vrot.lane.b32.xlu0 %v103, 40
    %v782 = vpop.permute.xlu0 %781
    %v786 = vsel %vm363, %v555, 0
    %788 = vmatpush.msra.mxu0 0.0
    %789 = vmatpush.msra.mxu0 0.0
    %790 = vmatpush.msra.mxu0 0.0
    %791 = vmatpush.msra.mxu0 0.0
    %792 = vmatpush.msra.mxu0 0.0
    %793 = vmatpush.msra.mxu0 0.0
    %794 = vmatpush.msra.mxu0 0.0
    %795 = vmatpush.msra.mxu0 0.0
    %796 = vmatpush.msra.mxu0 0.0
    %797 = vmatpush.msra.mxu0 0.0
    %798 = vmatpush.msra.mxu0 0.0
    %799 = vmatpush.msra.mxu0 0.0
    %800 = vmatpush.msra.mxu0 0.0
    %801 = vmatpush.msra.mxu0 0.0
    %802 = vmatpush.msra.mxu0 %v782
    %803 = vmatpush.msra.mxu0 %v780
    %804 = vmatmul.f32.gmra.mxu0 %v786
    %v805 = vpop.f32.mrf.mxu0
    %v806 = vadd.f32 0.0, %v805
    %807 = vdwg.mxu0
    %809 = vrot.lane.b32.xlu0 %v748, 8
    %v810 = vpop.permute.xlu0 %809
    %813 = vrot.lane.b32.xlu0 %v777, 16
    %v814 = vpop.permute.xlu0 %813
    %817 = vrot.lane.b32.xlu0 %v806, 24
    %v818 = vpop.permute.xlu0 %817
    %v820 = vsel %vm110, %v719, %v810
    %v821 = vsel %vm363, %v820, %v814
    %v822 = vsel %vm688, %v821, %v818
    %v823 = vld [vmem:[%s2] sm:$0xff]
    %v824 = vld [vmem:[%s2 + $0x8] sm:$0xff]
    %v825 = vld [vmem:[%s2 + $0x10] sm:$0xff]
    %v826 = vld [vmem:[%s2 + $0x18] sm:$0xff]
    %v827 = vperm.slane %v24, 3
    %v829 = vsel %vm29, %v689, 0
    %v832 = vsel %vm29, %v822, 0
    %834 = vmatpush.msra.mxu0 0.0
    %835 = vmatpush.msra.mxu0 0.0
    %836 = vmatpush.msra.mxu0 0.0
    %837 = vmatpush.msra.mxu0 0.0
    %838 = vmatpush.msra.mxu0 0.0
    %839 = vmatpush.msra.mxu0 0.0
    %840 = vmatpush.msra.mxu0 0.0
    %841 = vmatpush.msra.mxu0 0.0
    %842 = vmatpush.msra.mxu0 0.0
    %843 = vmatpush.msra.mxu0 0.0
    %844 = vmatpush.msra.mxu0 0.0
    %845 = vmatpush.msra.mxu0 0.0
    %846 = vmatpush.msra.mxu0 %v826
    %847 = vmatpush.msra.mxu0 %v825
    %848 = vmatpush.msra.mxu0 %v824
    %849 = vmatpush.msra.mxu0 %v823
    %850 = vmatmul.f32.gmra.mxu0 %v829
    %v851 = vpop.f32.mrf.mxu0
    %v852 = vadd.f32 %v827, %v851
    %853 = vmatmul.f32.gmra.mxu0 %v832
    %v854 = vpop.f32.mrf.mxu0
    %v855 = vadd.f32 %v827, %v854
    %856 = vdwg.mxu0
    %v857 = vsel %vm29, %v852, 0.0
    %858 = vadd.xlane.f32.xlu0 %v857
    %v859 = vpop.xlane.xlu0 %858
    %v860 = vsel %vm29, %v855, 0.0
    %861 = vadd.xlane.f32.xlu0 %v860
    %v862 = vpop.xlane.xlu0 %861
    %v863 = vrcp.pop 32.0
    %v864 = vmul.f32 32.0, %v863
    %v865 = vsub.f32 1.0, %v864
    %v866 = vmul.f32 %v863, %v865
    %v867 = vadd.f32 %v863, %v866
    %vm868 = vweird.f32 %v863
    %v869 = vsel %vm868, %v863, %v867
    %v870 = vmul.f32 %v859, %v869
    %v871 = vmul.f32 %v862, %v869
    %v872 = vsub.f32 %v852, %v870
    %v873 = vsub.f32 %v855, %v871
    %v874 = vmul.f32 %v872, %v872
    %v875 = vmul.f32 %v873, %v873
    %v876 = vsel %vm29, %v874, 0.0
    %877 = vadd.xlane.f32.xlu0 %v876
    %v878 = vpop.xlane.xlu0 %877
    %v879 = vsel %vm29, %v875, 0.0
    %880 = vadd.xlane.f32.xlu0 %v879
    %v881 = vpop.xlane.xlu0 %880
    %v882 = vmul.f32 %v878, %v869
    %v883 = vmul.f32 %v881, %v869
    %v884 = vadd.f32 %v882, 1e-05
    %v885 = vadd.f32 %v883, 1e-05
    %v886 = vrsqrt.pop %v884
    %v887 = vmul.f32 %v886, %v884
    %v888 = vmul.f32 %v887, %v886
    %v889 = vmul.f32 0.5, %v888
    %v890 = vsub.f32 1.5, %v889
    %v891 = vmul.f32 %v886, %v890
    %vm892 = vweird.f32 %v884
    %vm893 = vweird.f32 %v886
    %vm894 = vmor %vm892, %vm893
    %v895 = vsel %vm894, %v886, %v891
    %v896 = vrsqrt.pop %v885
    %v897 = vmul.f32 %v896, %v885
    %v898 = vmul.f32 %v897, %v896
    %v899 = vmul.f32 0.5, %v898
    %v900 = vsub.f32 1.5, %v899
    %v901 = vmul.f32 %v896, %v900
    %vm902 = vweird.f32 %v885
    %vm903 = vweird.f32 %v896
    %vm904 = vmor %vm902, %vm903
    %v905 = vsel %vm904, %v896, %v901
    %v906 = vmul.f32 %v872, %v895
    %v907 = vmul.f32 %v873, %v905
    %v908 = vperm.slane %v24, 4
    %v909 = vmul.f32 %v906, %v908
    %v910 = vmul.f32 %v907, %v908
    %v911 = vperm.slane %v24, 5
    %v912 = vadd.f32 %v909, %v911
    %v913 = vadd.f32 %v910, %v911
    %914 = vst.msk [vmem:[#allocation2] sm:$0xff] %vm29, %v912
    %915 = vst.msk [vmem:[#allocation2 + $0x8] sm:$0xff] %vm29, %v913
    // Predicated region
    $region18: #{tpu_custom_call.1} parent=1 // pred_check
      _
    $region19: #{tpu_custom_call.1} parent=1 // pred_check_branch
      %917 = sbr.rel (0) target = $region21
    $region20: #{tpu_custom_call.1} parent=1 // pred_region
      %919 = vsyncadd [#allocation3], 0
      %s920 = sshll.u32 [#allocation2], 4
      %s921 = int_to_ptr.vmem [resolvable:$true] %s920
      %s922 = sshll.u32 %s4, 4
      %s923 = int_to_ptr.hbm [resolvable:$true] %s922
      %928 = dma.vmem_to_hbm [thread:$0]  %s921, 256, %s923, [#allocation3], 128, 128, 8
    $region21: #{tpu_custom_call.1} parent=1 // pred_fallthru
      _
    // Predicated region
    $region22: #{tpu_custom_call.1} parent=1 // pred_check
      _
    $region23: #{tpu_custom_call.1} parent=1 // pred_check_branch
      %930 = sbr.rel (0) target = $region25
    $region24: #{tpu_custom_call.1} parent=1 // pred_region
      %932 = dma.done [#allocation3], 256
    $region25: #{tpu_custom_call.1} parent=1 // pred_fallthru
      _
    %933 = vsyncpa [#allocation3], 1

</llo_original>
